<compile_context>
chip_gen: v7x
topology: tpu7x:2x2x1
jax: 0.10.0
libtpu: 0.0.40
codegen_flags: <defaults>
</compile_context>

<pallas_src>
import jax
import jax.numpy as jnp
from jax import lax
from jax.experimental import pallas as pl
from jax.experimental.pallas import tpu as pltpu


def _round_up(x, m):
    return ((x + m - 1) // m) * m


def _make_kernel(tile_n, v_actual):
    """Kernel closure over the vocab tile width and the true vocab size."""

    def kernel(x_ref, w_ref, b_ref, o_ref, lse_ref, m_ref, s_ref):
        j = pl.program_id(0)

        @pl.when(j == 0)
        def _init():
            m_ref[...] = jnp.full(m_ref.shape, -jnp.inf, jnp.float32)
            s_ref[...] = jnp.zeros(s_ref.shape, jnp.float32)

        # Linear layer tile on the MXU: (B_pad, D) @ (D, TN) -> f32 accumulate.
        z = jnp.dot(x_ref[...], w_ref[...],
                    preferred_element_type=jnp.float32)
        z = jnp.maximum(z + b_ref[...], 0.0)           # bias + ReLU (VPU)

        # Mask vocab padding / ragged-last-tile garbage to -inf (post-ReLU),
        # so it never enters the softmax denominator or the stored logits.
        col = j * tile_n + lax.broadcasted_iota(jnp.int32, z.shape, 1)
        z = jnp.where(col < v_actual, z, -jnp.inf)

        # Online softmax statistics across vocab tiles.
        m_prev = m_ref[...]                                     # (B_pad, 1)
        m_new = jnp.maximum(m_prev, jnp.max(z, axis=-1, keepdims=True))
        alpha = jnp.exp(m_prev - m_new)
        s_ref[...] = alpha * s_ref[...] + jnp.sum(
            jnp.exp(z - m_new), axis=-1, keepdims=True)
        m_ref[...] = m_new

        # Stream the unnormalized (masked) logits tile out: lane-dense vst,
        # double-buffered by Pallas and overlapped with the next W tile DMA.
        o_ref[...] = z

        @pl.when(j == pl.num_programs(0) - 1)
        def _finalize():
            lse_ref[...] = m_ref[...] + jnp.log(s_ref[...])

    return kernel


def prepare_word2vec_params(emb_table, w_pt, b):
    """One-time parameter preparation (hoisted out of the per-call path).

    emb_table: (V, E) embedding table (kept f32; gathered in the wrapper).
    w_pt:      (V, D) PyTorch nn.Linear weight, D = context_size * E.
    b:         (V,)   nn.Linear bias.
    Returns (emb_table, W_bf16 (D, V_pad), bias_f32 (1, V_pad), vocab).
    """
    vocab, d = w_pt.shape
    v_pad = _round_up(vocab, 128)
    w_p = jnp.zeros((d, v_pad), jnp.bfloat16).at[:, :vocab].set(
        w_pt.T.astype(jnp.bfloat16))
    b_p = jnp.zeros((1, v_pad), jnp.float32).at[:, :vocab].set(
        b.astype(jnp.float32)[None, :])
    return emb_table, w_p, b_p, vocab


def word2vec_forward(inputs, prepared, *, tn=2048):
    """Word2Vec forward.

    inputs:   (C,) or (B, C) int32 context-word indices.
    prepared: output of prepare_word2vec_params.
    Returns (1, V) log-probs for a single context, (B, V) for a batch.
    """
    emb_table, w_p, b_p, vocab = prepared
    idx = inputs[None, :] if inputs.ndim == 1 else inputs        # (B, C)
    batch, context = idx.shape
    emb_dim = emb_table.shape[1]
    d = context * emb_dim
    v_pad = w_p.shape[1]

    # Embedding gather + flatten (data-dependent gather kept in plain JAX).
    x = jnp.take(emb_table, idx.reshape(-1), axis=0).reshape(batch, d)

    # bf16 rows pack 16 per vreg tile: pad the batch to 16 sublanes.
    b_rows = max(16, _round_up(batch, 16))
    x_p = jnp.zeros((b_rows, d), jnp.bfloat16).at[:batch].set(
        x.astype(jnp.bfloat16))

    tile_n = min(_round_up(tn, 128), v_pad)
    n_tiles = pl.cdiv(v_pad, tile_n)          # ragged last tile allowed

    logits, lse = pl.pallas_call(
        _make_kernel(tile_n, vocab),
        out_shape=(jax.ShapeDtypeStruct((b_rows, v_pad), jnp.float32),
                   jax.ShapeDtypeStruct((b_rows, 1), jnp.float32)),
        grid_spec=pltpu.PrefetchScalarGridSpec(
            num_scalar_prefetch=0,
            grid=(n_tiles,),
            in_specs=[
                # x: tiny, resident across the whole vocab sweep.
                pl.BlockSpec((b_rows, d), lambda j: (0, 0)),
                # W: streamed bf16 column tiles, double-buffered by Pallas.
                pl.BlockSpec((d, tile_n), lambda j: (0, j)),
                # bias: streamed column tiles (negligible vs W stream).
                pl.BlockSpec((1, tile_n), lambda j: (0, j)),
            ],
            out_specs=[
                # Unnormalized logits: streamed per-tile (no resident slab).
                pl.BlockSpec((b_rows, tile_n), lambda j: (0, j)),
                # log-sum-exp: resident, written once on the last tile.
                pl.BlockSpec((b_rows, 1), lambda j: (0, 0)),
            ],
            scratch_shapes=[
                pltpu.VMEM((b_rows, 1), jnp.float32),   # running max
                pltpu.VMEM((b_rows, 1), jnp.float32),   # running sum of exp
            ],
        ),
        compiler_params=pltpu.CompilerParams(
            dimension_semantics=("arbitrary",),
            vmem_limit_bytes=32 * 1024 * 1024),
    )(x_p, w_p, b_p)

    # Final normalization: single cheap elementwise pass over the small batch.
    return logits[:batch, :vocab] - lse[:batch]


if __name__ == "__main__":
    # Small, module-consistent shapes (big enough to exercise tiling/masking).
    vocab_size = 1000
    embedding_dim = 32
    context_size = 4
    batch = 2
    d = context_size * embedding_dim

    key = jax.random.PRNGKey(0)
    k_emb, k_w, k_b, k_idx = jax.random.split(key, 4)

    # nn.Embedding default init: N(0, 1).
    emb_table = jax.random.normal(k_emb, (vocab_size, embedding_dim),
                                  dtype=jnp.float32)
    # nn.Linear default init: U(-1/sqrt(fan_in), 1/sqrt(fan_in)).
    bound = 1.0 / jnp.sqrt(jnp.float32(d))
    w_pt = jax.random.uniform(k_w, (vocab_size, d), minval=-bound,
                              maxval=bound, dtype=jnp.float32)
    b = jax.random.uniform(k_b, (vocab_size,), minval=-bound, maxval=bound,
                           dtype=jnp.float32)

    # A small batch of context windows.
    inputs = jax.random.randint(k_idx, (batch, context_size), 0, vocab_size,
                                dtype=jnp.int32)

    # One-time parameter prep (hoisted out of the per-call path).
    prepared = prepare_word2vec_params(emb_table, w_pt, b)

    # References.
    x_ref = jnp.take(emb_table, inputs.reshape(-1), axis=0).reshape(batch, d)
    z_bf = jnp.dot(x_ref.astype(jnp.bfloat16), w_pt.T.astype(jnp.bfloat16),
                   preferred_element_type=jnp.float32) + b[None, :]
    ref_bf = jax.nn.log_softmax(jnp.maximum(z_bf, 0.0), axis=-1)
    ref32 = jax.nn.log_softmax(jnp.maximum(x_ref @ w_pt.T + b, 0.0), axis=-1)

    # Default tile width (single 1024-wide tile at this vocab size).
    log_probs = jax.block_until_ready(word2vec_forward(inputs, prepared))
    assert log_probs.shape == (batch, vocab_size)
    assert jnp.allclose(log_probs, ref_bf, atol=2e-3, rtol=2e-3)
    assert jnp.allclose(log_probs, ref32, atol=5e-2, rtol=5e-2)

    # Multi-tile path: four exact 256-wide vocab tiles.
    lp_multi = jax.block_until_ready(word2vec_forward(inputs, prepared, tn=256))
    assert jnp.allclose(lp_multi, ref_bf, atol=2e-3, rtol=2e-3)

    # Ragged path: 768-wide tiles -> last tile has only 256 valid columns.
    lp_rag = jax.block_until_ready(word2vec_forward(inputs, prepared, tn=768))
    assert jnp.allclose(lp_rag, ref_bf, atol=2e-3, rtol=2e-3)

    # Single-context call matching the module's forward exactly: (C,) -> (1, V).
    lp1 = jax.block_until_ready(word2vec_forward(inputs[0], prepared))
    assert lp1.shape == (1, vocab_size)
    assert jnp.allclose(lp1, log_probs[0:1], atol=1e-5, rtol=1e-5)

    print("KERNEL_OK")
</pallas_src>

<mosaic_0001>
module attributes {stable_mosaic.version = 11 : i64} {
  func.func @kernel(%arg0: i32, %arg1: memref<16x128xbf16, #tpu.memory_space<vmem>>, %arg2: memref<128x1024xbf16, #tpu.memory_space<vmem>>, %arg3: memref<1x1024xf32, #tpu.memory_space<vmem>>, %arg4: memref<16x1024xf32, #tpu.memory_space<vmem>>, %arg5: memref<16x1xf32, #tpu.memory_space<vmem>>, %arg6: memref<16x1xf32, #tpu.memory_space<vmem>>, %arg7: memref<16x1xf32, #tpu.memory_space<vmem>>) attributes {dimension_semantics = [#tpu.dimension_semantics<arbitrary>], iteration_bounds = array<i64: 1>, scalar_prefetch = 0 : i64, scratch_operands = 2 : i64, tpu.core_type = #tpu.core_type<tc>, window_params = [{pipeline_mode = #tpu.pipeline_mode<synchronous>, transform_indices = @transform_0, window_bounds = array<i64: 16, 128>}, {transform_indices = @transform_1, window_bounds = array<i64: 128, 1024>}, {transform_indices = @transform_2, window_bounds = array<i64: 1, 1024>}, {transform_indices = @transform_3, window_bounds = array<i64: 16, 1024>}, {pipeline_mode = #tpu.pipeline_mode<synchronous>, transform_indices = @transform_4, window_bounds = array<i64: 16, 1>}]} {
    %c0_i32 = arith.constant 0 : i32
    %0 = arith.cmpi eq, %arg0, %c0_i32 : i32
    %1 = arith.extui %0 : i1 to i32
    %c0_i32_0 = arith.constant 0 : i32
    %2 = arith.cmpi ne, %1, %c0_i32_0 : i32
    scf.if %2 {
      %cst_22 = arith.constant 0xFF800000 : f32
      %39 = vector.broadcast %cst_22 : f32 to vector<16x1xf32>
      %c0_23 = arith.constant 0 : index
      %c0_24 = arith.constant 0 : index
      %40 = vector.load %arg6[%c0_23, %c0_24] : memref<16x1xf32, #tpu.memory_space<vmem>>, vector<16x1xf32>
      tpu.vector_store %arg6[%c0_23, %c0_24], %39 {strides = array<i32>} : memref<16x1xf32, #tpu.memory_space<vmem>>, vector<16x1xf32>,
      %cst_25 = arith.constant 0.000000e+00 : f32
      %41 = vector.broadcast %cst_25 : f32 to vector<16x1xf32>
      %c0_26 = arith.constant 0 : index
      %c0_27 = arith.constant 0 : index
      %42 = vector.load %arg7[%c0_26, %c0_27] : memref<16x1xf32, #tpu.memory_space<vmem>>, vector<16x1xf32>
      tpu.vector_store %arg7[%c0_26, %c0_27], %41 {strides = array<i32>} : memref<16x1xf32, #tpu.memory_space<vmem>>, vector<16x1xf32>,
    } else {
    }
    %c0 = arith.constant 0 : index
    %c0_1 = arith.constant 0 : index
    %3 = vector.load %arg1[%c0, %c0_1] : memref<16x128xbf16, #tpu.memory_space<vmem>>, vector<16x128xbf16>
    %c0_2 = arith.constant 0 : index
    %c0_3 = arith.constant 0 : index
    %4 = vector.load %arg2[%c0_2, %c0_3] : memref<128x1024xbf16, #tpu.memory_space<vmem>>, vector<128x1024xbf16>
    %cst = arith.constant dense<0.000000e+00> : vector<16x1024xf32>
    %5 = tpu.matmul %3, %4, %cst {dimension_numbers = #tpu.dot_dimension_numbers<[1], [0], [0], [1], [0, 0, 1, 1], [], []>} : vector<16x128xbf16>, vector<128x1024xbf16>, vector<16x1024xf32> -> vector<16x1024xf32>
    %c0_4 = arith.constant 0 : index
    %c0_5 = arith.constant 0 : index
    %6 = vector.load %arg3[%c0_4, %c0_5] : memref<1x1024xf32, #tpu.memory_space<vmem>>, vector<1x1024xf32>
    %7 = vector.broadcast %6 : vector<1x1024xf32> to vector<16x1024xf32>
    %8 = arith.addf %5, %7 : vector<16x1024xf32>
    %cst_6 = arith.constant 0.000000e+00 : f32
    %9 = vector.broadcast %cst_6 : f32 to vector<16x1024xf32>
    %10 = arith.maximumf %8, %9 : vector<16x1024xf32>
    %c1024_i32 = arith.constant 1024 : i32
    %11 = arith.muli %arg0, %c1024_i32 : i32
    %12 = tpu.iota {dimensions = array<i32: 1>} : vector<16x1024xi32>
    %13 = vector.broadcast %11 : i32 to vector<16x1024xi32>
    %14 = arith.addi %13, %12 : vector<16x1024xi32>
    %c1000_i32 = arith.constant 1000 : i32
    %15 = vector.broadcast %c1000_i32 : i32 to vector<16x1024xi32>
    %16 = arith.cmpi slt, %14, %15 : vector<16x1024xi32>
    %cst_7 = arith.constant 0xFF800000 : f32
    %17 = vector.broadcast %cst_7 : f32 to vector<16x1024xf32>
    %18 = arith.select %16, %10, %17 : vector<16x1024xi1>, vector<16x1024xf32>
    %c0_8 = arith.constant 0 : index
    %c0_9 = arith.constant 0 : index
    %19 = vector.load %arg6[%c0_8, %c0_9] : memref<16x1xf32, #tpu.memory_space<vmem>>, vector<16x1xf32>
    %cst_10 = arith.constant dense<0xFF800000> : vector<16xf32>
    %20 = vector.multi_reduction <maximumf>, %18, %cst_10 [1] : vector<16x1024xf32> to vector<16xf32>
    %21 = vector.shape_cast %20 : vector<16xf32> to vector<16x1xf32>
    %22 = arith.maximumf %19, %21 : vector<16x1xf32>
    %23 = arith.subf %19, %22 : vector<16x1xf32>
    %24 = math.exp %23 : vector<16x1xf32>
    %c0_11 = arith.constant 0 : index
    %c0_12 = arith.constant 0 : index
    %25 = vector.load %arg7[%c0_11, %c0_12] : memref<16x1xf32, #tpu.memory_space<vmem>>, vector<16x1xf32>
    %26 = arith.mulf %24, %25 : vector<16x1xf32>
    %27 = vector.broadcast %22 : vector<16x1xf32> to vector<16x1024xf32>
    %28 = arith.subf %18, %27 : vector<16x1024xf32>
    %29 = math.exp %28 : vector<16x1024xf32>
    %cst_13 = arith.constant dense<0.000000e+00> : vector<16xf32>
    %30 = vector.multi_reduction <add>, %29, %cst_13 [1] : vector<16x1024xf32> to vector<16xf32>
    %31 = vector.shape_cast %30 : vector<16xf32> to vector<16x1xf32>
    %32 = arith.addf %26, %31 : vector<16x1xf32>
    %c0_14 = arith.constant 0 : index
    %c0_15 = arith.constant 0 : index
    %33 = vector.load %arg7[%c0_14, %c0_15] : memref<16x1xf32, #tpu.memory_space<vmem>>, vector<16x1xf32>
    tpu.vector_store %arg7[%c0_14, %c0_15], %32 {strides = array<i32>} : memref<16x1xf32, #tpu.memory_space<vmem>>, vector<16x1xf32>,
    %c0_16 = arith.constant 0 : index
    %c0_17 = arith.constant 0 : index
    %34 = vector.load %arg6[%c0_16, %c0_17] : memref<16x1xf32, #tpu.memory_space<vmem>>, vector<16x1xf32>
    tpu.vector_store %arg6[%c0_16, %c0_17], %22 {strides = array<i32>} : memref<16x1xf32, #tpu.memory_space<vmem>>, vector<16x1xf32>,
    %c0_18 = arith.constant 0 : index
    %c0_19 = arith.constant 0 : index
    %35 = vector.load %arg4[%c0_18, %c0_19] : memref<16x1024xf32, #tpu.memory_space<vmem>>, vector<16x1024xf32>
    tpu.vector_store %arg4[%c0_18, %c0_19], %18 {strides = array<i32>} : memref<16x1024xf32, #tpu.memory_space<vmem>>, vector<16x1024xf32>,
    %c0_i32_20 = arith.constant 0 : i32
    %36 = arith.cmpi eq, %arg0, %c0_i32_20 : i32
    %37 = arith.extui %36 : i1 to i32
    %c0_i32_21 = arith.constant 0 : i32
    %38 = arith.cmpi ne, %37, %c0_i32_21 : i32
    scf.if %38 {
      %c0_22 = arith.constant 0 : index
      %c0_23 = arith.constant 0 : index
      %39 = vector.load %arg6[%c0_22, %c0_23] : memref<16x1xf32, #tpu.memory_space<vmem>>, vector<16x1xf32>
      %c0_24 = arith.constant 0 : index
      %c0_25 = arith.constant 0 : index
      %40 = vector.load %arg7[%c0_24, %c0_25] : memref<16x1xf32, #tpu.memory_space<vmem>>, vector<16x1xf32>
      %41 = math.log %40 : vector<16x1xf32>
      %42 = arith.addf %39, %41 : vector<16x1xf32>
      %c0_26 = arith.constant 0 : index
      %c0_27 = arith.constant 0 : index
      %43 = vector.load %arg5[%c0_26, %c0_27] : memref<16x1xf32, #tpu.memory_space<vmem>>, vector<16x1xf32>
      tpu.vector_store %arg5[%c0_26, %c0_27], %42 {strides = array<i32>} : memref<16x1xf32, #tpu.memory_space<vmem>>, vector<16x1xf32>,
    } else {
    }
    return
  }
  func.func @transform_0(%arg0: i32) -> (i32, i32) {
    %c0_i32 = arith.constant 0 : i32
    %c0_i32_0 = arith.constant 0 : i32
    %c0_i32_1 = arith.constant 0 : i32
    return %c0_i32, %c0_i32_0 : i32, i32
  }
  func.func @transform_1(%arg0: i32) -> (i32, i32) {
    %c0_i32 = arith.constant 0 : i32
    %c0_i32_0 = arith.constant 0 : i32
    return %c0_i32, %arg0 : i32, i32
  }
  func.func @transform_2(%arg0: i32) -> (i32, i32) {
    %c0_i32 = arith.constant 0 : i32
    %c0_i32_0 = arith.constant 0 : i32
    return %c0_i32, %arg0 : i32, i32
  }
  func.func @transform_3(%arg0: i32) -> (i32, i32) {
    %c0_i32 = arith.constant 0 : i32
    %c0_i32_0 = arith.constant 0 : i32
    return %c0_i32, %arg0 : i32, i32
  }
  func.func @transform_4(%arg0: i32) -> (i32, i32) {
    %c0_i32 = arith.constant 0 : i32
    %c0_i32_0 = arith.constant 0 : i32
    %c0_i32_1 = arith.constant 0 : i32
    return %c0_i32, %c0_i32_0 : i32, i32
  }
}

</mosaic_0001>

<llo_original>
// kernel: tpu_custom_call.1
$region0: #{tpu_custom_call.1}
  #allocation0 [shape = 'u32[]', space=smem, size = 0x4, offset = 0x4, fixed_abs, tag = 'smem constant byte address 0x4 - core index']
  #allocation1 [shape = 'u32[144,128]{1,0:T(1,128)}', space=vmem, size = 0x12000, scoped, tag = 'internal scratch']
  #allocation2 [shape = 'f32[16,1]{1,0:T(8,128)}', space=vmem, size = 0x2000, scoped, tag = 'scratch operand']
  #allocation3 [shape = 'f32[16,1]{1,0:T(8,128)}', space=vmem, size = 0x2000, scoped, tag = 'scratch operand']
  %s0 = inlined_call_operand.hbm [shape: bf16[16,128], index: 0, kind: input, shape index: {}]
  %s1 = inlined_call_operand.hbm [shape: bf16[128,1024], index: 1, kind: input, shape index: {}]
  %s2 = inlined_call_operand.hbm [shape: f32[1,1024], index: 2, kind: input, shape index: {}]
  %s3 = inlined_call_operand.hbm [shape: f32[16,1024], index: 3, kind: output, shape index: {0}]
  %s4 = inlined_call_operand.vmem [shape: f32[16,1], index: 4, kind: output, shape index: {1}]
  %5 = xla_tuple %s3, %s4
  %s6 = sld [smem:[#allocation0]]
  $region50: #{tpu_custom_call.1} parent=0
    _
  %s8 = ssub.s32 1, %s6
  %s9 = scalar_select 0, %s8, %s6
  $region1: #{tpu_custom_call.1} parent=0
    #allocation4 [shape = 'u8[4096]{0}', space=vmem, size = 0x1000, scoped, tag = 'input window, operand 0, single buffered']
    #allocation5 [shape = 's32[1]{0}', space=sflag, size = 0x4, scoped, tag = 'scoped memory for tpu_custom_call.1']
    #allocation6 [shape = 's32[1]{0}', space=sflag, size = 0x4, scoped, tag = 'scoped memory for tpu_custom_call.1']
    #allocation7 [shape = 'u8[262144]{0}', space=vmem, size = 0x40000, scoped, tag = 'input window, operand 1, single buffered']
    #allocation8 [shape = 's32[1]{0}', space=sflag, size = 0x4, scoped, tag = 'scoped memory for tpu_custom_call.1']
    #allocation9 [shape = 'u8[4096]{0}', space=vmem, size = 0x1000, scoped, tag = 'input window, operand 2, single buffered']
    #allocation10 [shape = 'u8[65536]{0}', space=vmem, size = 0x10000, scoped, tag = 'output window, operand 0, single buffered']
    %10 = vsyncpa [#allocation5], 0
    %11 = vsyncpa [#allocation8], 0
    %12 = vsyncpa [#allocation6], 0
    // Predicated region
    $region2: #{tpu_custom_call.1} parent=1 // pred_check
      _
    $region3: #{tpu_custom_call.1} parent=1 // pred_check_branch
      %14 = sbr.rel (0) target = $region5
    $region4: #{tpu_custom_call.1} parent=1 // pred_region
      %s16 = ssub.s32 128, 128
      %17 = vsyncadd [#allocation5], %s16
      %s18 = sshll.u32 [#allocation4], 4
      %s19 = int_to_ptr.vmem [resolvable:$true] %s18
      %24 = dma.hbm_to_vmem [thread:$0]  %s0, 128, %s19, [#allocation5], 64, 64, 4
    $region5: #{tpu_custom_call.1} parent=1 // pred_fallthru
      _
    // Predicated region
    $region6: #{tpu_custom_call.1} parent=1 // pred_check
      _
    $region7: #{tpu_custom_call.1} parent=1 // pred_check_branch
      %26 = sbr.rel (0) target = $region9
    $region8: #{tpu_custom_call.1} parent=1 // pred_region
      %s28 = ssub.s32 8192, 8192
      %29 = vsyncadd [#allocation8], %s28
      %s30 = sshll.u32 [#allocation7], 4
      %s31 = int_to_ptr.vmem [resolvable:$true] %s30
      %36 = dma.hbm_to_vmem [thread:$0]  %s1, 8192, %s31, [#allocation8], 512, 512, 32
    $region9: #{tpu_custom_call.1} parent=1 // pred_fallthru
      _
    // Predicated region
    $region10: #{tpu_custom_call.1} parent=1 // pred_check
      _
    $region11: #{tpu_custom_call.1} parent=1 // pred_check_branch
      %38 = sbr.rel (0) target = $region13
    $region12: #{tpu_custom_call.1} parent=1 // pred_region
      %s40 = ssub.s32 128, 128
      %41 = vsyncadd [#allocation8], %s40
      %s43 = sshll.u32 [#allocation9], 4
      %s44 = int_to_ptr.vmem [resolvable:$true] %s43
      %46 = dma.hbm_to_vmem [thread:$0]  %s2, 128, %s44, [#allocation8]
    $region13: #{tpu_custom_call.1} parent=1 // pred_fallthru
      _
    // Predicated region
    $region14: #{tpu_custom_call.1} parent=1 // pred_check
      _
    $region15: #{tpu_custom_call.1} parent=1 // pred_check_branch
      %48 = sbr.rel (0) target = $region17
    $region16: #{tpu_custom_call.1} parent=1 // pred_region
      %49 = dma.done [#allocation5], 128
    $region17: #{tpu_custom_call.1} parent=1 // pred_fallthru
      _
    // Predicated region
    $region18: #{tpu_custom_call.1} parent=1 // pred_check
      _
    $region19: #{tpu_custom_call.1} parent=1 // pred_check_branch
      %51 = sbr.rel (0) target = $region21
    $region20: #{tpu_custom_call.1} parent=1 // pred_region
      %52 = dma.done [#allocation8], 8192
    $region21: #{tpu_custom_call.1} parent=1 // pred_fallthru
      _
    // Predicated region
    $region22: #{tpu_custom_call.1} parent=1 // pred_check
      _
    $region23: #{tpu_custom_call.1} parent=1 // pred_check_branch
      %54 = sbr.rel (0) target = $region25
    $region24: #{tpu_custom_call.1} parent=1 // pred_region
      %55 = dma.done [#allocation8], 128
    $region25: #{tpu_custom_call.1} parent=1 // pred_fallthru
      _
    %p57 = scmp.eq.s32.totalorder 0, 0
    // Predicated region
    $region26: #{tpu_custom_call.1} parent=1 // pred_check
      %p58 = pneg %p57
    $region27: #{tpu_custom_call.1} parent=1 // pred_check_branch
      %60 = sbr.rel (%p58) target = $region29
    $region28: #{tpu_custom_call.1} parent=1 // pred_region
      %vm61 = vcmask 7168
      %62 = vst.msk [vmem:[#allocation2] sm:$0xff] %vm61, -inf
      %63 = vst.msk [vmem:[#allocation2 + $0x8] sm:$0xff] %vm61, -inf
      %64 = vst.msk [vmem:[#allocation3] sm:$0xff] %vm61, 0.0
      %65 = vst.msk [vmem:[#allocation3 + $0x8] sm:$0xff] %vm61, 0.0
    $region29: #{tpu_custom_call.1} parent=1 // pred_fallthru
      _
    %v66 = vld [vmem:[#allocation4] sm:$0xf]
    %v67 = vld [vmem:[#allocation4 + $0x4] sm:$0xf]
    %v68 = vld [vmem:[#allocation7] sm:$0xff]
    %v69 = vld [vmem:[#allocation7 + $0x8] sm:$0xff]
    %v70 = vld [vmem:[#allocation7 + $0x10] sm:$0xff]
    %v71 = vld [vmem:[#allocation7 + $0x18] sm:$0xff]
    %v72 = vld [vmem:[#allocation7 + $0x20] sm:$0xff]
    %v73 = vld [vmem:[#allocation7 + $0x28] sm:$0xff]
    %v74 = vld [vmem:[#allocation7 + $0x30] sm:$0xff]
    %v75 = vld [vmem:[#allocation7 + $0x38] sm:$0xff]
    %v76 = vld [vmem:[#allocation7 + $0x40] sm:$0xff]
    %v77 = vld [vmem:[#allocation7 + $0x48] sm:$0xff]
    %v78 = vld [vmem:[#allocation7 + $0x50] sm:$0xff]
    %v79 = vld [vmem:[#allocation7 + $0x58] sm:$0xff]
    %v80 = vld [vmem:[#allocation7 + $0x60] sm:$0xff]
    %v81 = vld [vmem:[#allocation7 + $0x68] sm:$0xff]
    %v82 = vld [vmem:[#allocation7 + $0x70] sm:$0xff]
    %v83 = vld [vmem:[#allocation7 + $0x78] sm:$0xff]
    %v84 = vld [vmem:[#allocation7 + $0x80] sm:$0xff]
    %v85 = vld [vmem:[#allocation7 + $0x88] sm:$0xff]
    %v86 = vld [vmem:[#allocation7 + $0x90] sm:$0xff]
    %v87 = vld [vmem:[#allocation7 + $0x98] sm:$0xff]
    %v88 = vld [vmem:[#allocation7 + $0xa0] sm:$0xff]
    %v89 = vld [vmem:[#allocation7 + $0xa8] sm:$0xff]
    %v90 = vld [vmem:[#allocation7 + $0xb0] sm:$0xff]
    %v91 = vld [vmem:[#allocation7 + $0xb8] sm:$0xff]
    %v92 = vld [vmem:[#allocation7 + $0xc0] sm:$0xff]
    %v93 = vld [vmem:[#allocation7 + $0xc8] sm:$0xff]
    %v94 = vld [vmem:[#allocation7 + $0xd0] sm:$0xff]
    %v95 = vld [vmem:[#allocation7 + $0xd8] sm:$0xff]
    %v96 = vld [vmem:[#allocation7 + $0xe0] sm:$0xff]
    %v97 = vld [vmem:[#allocation7 + $0xe8] sm:$0xff]
    %v98 = vld [vmem:[#allocation7 + $0xf0] sm:$0xff]
    %v99 = vld [vmem:[#allocation7 + $0xf8] sm:$0xff]
    %v100 = vld [vmem:[#allocation7 + $0x100] sm:$0xff]
    %v101 = vld [vmem:[#allocation7 + $0x108] sm:$0xff]
    %v102 = vld [vmem:[#allocation7 + $0x110] sm:$0xff]
    %v103 = vld [vmem:[#allocation7 + $0x118] sm:$0xff]
    %v104 = vld [vmem:[#allocation7 + $0x120] sm:$0xff]
    %v105 = vld [vmem:[#allocation7 + $0x128] sm:$0xff]
    %v106 = vld [vmem:[#allocation7 + $0x130] sm:$0xff]
    %v107 = vld [vmem:[#allocation7 + $0x138] sm:$0xff]
    %v108 = vld [vmem:[#allocation7 + $0x140] sm:$0xff]
    %v109 = vld [vmem:[#allocation7 + $0x148] sm:$0xff]
    %v110 = vld [vmem:[#allocation7 + $0x150] sm:$0xff]
    %v111 = vld [vmem:[#allocation7 + $0x158] sm:$0xff]
    %v112 = vld [vmem:[#allocation7 + $0x160] sm:$0xff]
    %v113 = vld [vmem:[#allocation7 + $0x168] sm:$0xff]
    %v114 = vld [vmem:[#allocation7 + $0x170] sm:$0xff]
    %v115 = vld [vmem:[#allocation7 + $0x178] sm:$0xff]
    %v116 = vld [vmem:[#allocation7 + $0x180] sm:$0xff]
    %v117 = vld [vmem:[#allocation7 + $0x188] sm:$0xff]
    %v118 = vld [vmem:[#allocation7 + $0x190] sm:$0xff]
    %v119 = vld [vmem:[#allocation7 + $0x198] sm:$0xff]
    %v120 = vld [vmem:[#allocation7 + $0x1a0] sm:$0xff]
    %v121 = vld [vmem:[#allocation7 + $0x1a8] sm:$0xff]
    %v122 = vld [vmem:[#allocation7 + $0x1b0] sm:$0xff]
    %v123 = vld [vmem:[#allocation7 + $0x1b8] sm:$0xff]
    %v124 = vld [vmem:[#allocation7 + $0x1c0] sm:$0xff]
    %v125 = vld [vmem:[#allocation7 + $0x1c8] sm:$0xff]
    %v126 = vld [vmem:[#allocation7 + $0x1d0] sm:$0xff]
    %v127 = vld [vmem:[#allocation7 + $0x1d8] sm:$0xff]
    %v128 = vld [vmem:[#allocation7 + $0x1e0] sm:$0xff]
    %v129 = vld [vmem:[#allocation7 + $0x1e8] sm:$0xff]
    %v130 = vld [vmem:[#allocation7 + $0x1f0] sm:$0xff]
    %v131 = vld [vmem:[#allocation7 + $0x1f8] sm:$0xff]
    %v132 = vld [vmem:[#allocation9] sm:$0xff]
    %v134 = vlaneseq
    %v135 = vshrl.u32 %v134, 7
    %v136 = vsub.s32 0, %v135
    %v137 = vrot.slane %v132, %v136
    %v138 = vlaneseq
    %v139 = vshrl.u32 %v138, 7
    %v140 = vsub.s32 1, %v139
    %v141 = vrot.slane %v132, %v140
    %v142 = vlaneseq
    %v143 = vshrl.u32 %v142, 7
    %v144 = vsub.s32 2, %v143
    %v145 = vrot.slane %v132, %v144
    %v146 = vlaneseq
    %v147 = vshrl.u32 %v146, 7
    %v148 = vsub.s32 3, %v147
    %v149 = vrot.slane %v132, %v148
    %v150 = vlaneseq
    %v151 = vshrl.u32 %v150, 7
    %v152 = vsub.s32 4, %v151
    %v153 = vrot.slane %v132, %v152
    %v154 = vlaneseq
    %v155 = vshrl.u32 %v154, 7
    %v156 = vsub.s32 5, %v155
    %v157 = vrot.slane %v132, %v156
    %v158 = vlaneseq
    %v159 = vshrl.u32 %v158, 7
    %v160 = vsub.s32 6, %v159
    %v161 = vrot.slane %v132, %v160
    %v162 = vlaneseq
    %v163 = vshrl.u32 %v162, 7
    %v164 = vsub.s32 7, %v163
    %v165 = vrot.slane %v132, %v164
    %v176 = vunpack.c.l.b16 %v66
    %v177 = vunpack.c.l.b16 %v67
    %v178 = vpack.c.b16 %v177, %v176
    %v244 = vunpack.c.l.b16 %v68
    %v245 = vunpack.c.h.b16 %v68
    %v246 = vunpack.c.l.b16 %v69
    %v247 = vunpack.c.h.b16 %v69
    %v248 = vunpack.c.l.b16 %v70
    %v249 = vunpack.c.h.b16 %v70
    %v250 = vunpack.c.l.b16 %v71
    %v251 = vunpack.c.h.b16 %v71
    %v252 = vunpack.c.l.b16 %v72
    %v253 = vunpack.c.h.b16 %v72
    %v254 = vunpack.c.l.b16 %v73
    %v255 = vunpack.c.h.b16 %v73
    %v256 = vunpack.c.l.b16 %v74
    %v257 = vunpack.c.h.b16 %v74
    %v258 = vunpack.c.l.b16 %v75
    %v259 = vunpack.c.h.b16 %v75
    %v260 = vunpack.c.l.b16 %v76
    %v261 = vunpack.c.h.b16 %v76
    %v262 = vunpack.c.l.b16 %v77
    %v263 = vunpack.c.h.b16 %v77
    %v264 = vunpack.c.l.b16 %v78
    %v265 = vunpack.c.h.b16 %v78
    %v266 = vunpack.c.l.b16 %v79
    %v267 = vunpack.c.h.b16 %v79
    %v268 = vunpack.c.l.b16 %v80
    %v269 = vunpack.c.h.b16 %v80
    %v270 = vunpack.c.l.b16 %v81
    %v271 = vunpack.c.h.b16 %v81
    %v272 = vunpack.c.l.b16 %v82
    %v273 = vunpack.c.h.b16 %v82
    %v274 = vunpack.c.l.b16 %v83
    %v275 = vunpack.c.h.b16 %v83
    %v276 = vunpack.c.l.b16 %v84
    %v277 = vunpack.c.h.b16 %v84
    %v278 = vunpack.c.l.b16 %v85
    %v279 = vunpack.c.h.b16 %v85
    %v280 = vunpack.c.l.b16 %v86
    %v281 = vunpack.c.h.b16 %v86
    %v282 = vunpack.c.l.b16 %v87
    %v283 = vunpack.c.h.b16 %v87
    %v284 = vunpack.c.l.b16 %v88
    %v285 = vunpack.c.h.b16 %v88
    %v286 = vunpack.c.l.b16 %v89
    %v287 = vunpack.c.h.b16 %v89
    %v288 = vunpack.c.l.b16 %v90
    %v289 = vunpack.c.h.b16 %v90
    %v290 = vunpack.c.l.b16 %v91
    %v291 = vunpack.c.h.b16 %v91
    %v292 = vunpack.c.l.b16 %v92
    %v293 = vunpack.c.h.b16 %v92
    %v294 = vunpack.c.l.b16 %v93
    %v295 = vunpack.c.h.b16 %v93
    %v296 = vunpack.c.l.b16 %v94
    %v297 = vunpack.c.h.b16 %v94
    %v298 = vunpack.c.l.b16 %v95
    %v299 = vunpack.c.h.b16 %v95
    %v300 = vunpack.c.l.b16 %v96
    %v301 = vunpack.c.h.b16 %v96
    %v302 = vunpack.c.l.b16 %v97
    %v303 = vunpack.c.h.b16 %v97
    %v304 = vunpack.c.l.b16 %v98
    %v305 = vunpack.c.h.b16 %v98
    %v306 = vunpack.c.l.b16 %v99
    %v307 = vunpack.c.h.b16 %v99
    %v308 = vunpack.c.l.b16 %v100
    %v309 = vunpack.c.h.b16 %v100
    %v310 = vunpack.c.l.b16 %v101
    %v311 = vunpack.c.h.b16 %v101
    %v312 = vunpack.c.l.b16 %v102
    %v313 = vunpack.c.h.b16 %v102
    %v314 = vunpack.c.l.b16 %v103
    %v315 = vunpack.c.h.b16 %v103
    %v316 = vunpack.c.l.b16 %v104
    %v317 = vunpack.c.h.b16 %v104
    %v318 = vunpack.c.l.b16 %v105
    %v319 = vunpack.c.h.b16 %v105
    %v320 = vunpack.c.l.b16 %v106
    %v321 = vunpack.c.h.b16 %v106
    %v322 = vunpack.c.l.b16 %v107
    %v323 = vunpack.c.h.b16 %v107
    %v324 = vunpack.c.l.b16 %v108
    %v325 = vunpack.c.h.b16 %v108
    %v326 = vunpack.c.l.b16 %v109
    %v327 = vunpack.c.h.b16 %v109
    %v328 = vunpack.c.l.b16 %v110
    %v329 = vunpack.c.h.b16 %v110
    %v330 = vunpack.c.l.b16 %v111
    %v331 = vunpack.c.h.b16 %v111
    %v332 = vunpack.c.l.b16 %v112
    %v333 = vunpack.c.h.b16 %v112
    %v334 = vunpack.c.l.b16 %v113
    %v335 = vunpack.c.h.b16 %v113
    %v336 = vunpack.c.l.b16 %v114
    %v337 = vunpack.c.h.b16 %v114
    %v338 = vunpack.c.l.b16 %v115
    %v339 = vunpack.c.h.b16 %v115
    %v340 = vunpack.c.l.b16 %v116
    %v341 = vunpack.c.h.b16 %v116
    %v342 = vunpack.c.l.b16 %v117
    %v343 = vunpack.c.h.b16 %v117
    %v344 = vunpack.c.l.b16 %v118
    %v345 = vunpack.c.h.b16 %v118
    %v346 = vunpack.c.l.b16 %v119
    %v347 = vunpack.c.h.b16 %v119
    %v348 = vunpack.c.l.b16 %v120
    %v349 = vunpack.c.h.b16 %v120
    %v350 = vunpack.c.l.b16 %v121
    %v351 = vunpack.c.h.b16 %v121
    %v352 = vunpack.c.l.b16 %v122
    %v353 = vunpack.c.h.b16 %v122
    %v354 = vunpack.c.l.b16 %v123
    %v355 = vunpack.c.h.b16 %v123
    %v356 = vunpack.c.l.b16 %v124
    %v357 = vunpack.c.h.b16 %v124
    %v358 = vunpack.c.l.b16 %v125
    %v359 = vunpack.c.h.b16 %v125
    %v360 = vunpack.c.l.b16 %v126
    %v361 = vunpack.c.h.b16 %v126
    %v362 = vunpack.c.l.b16 %v127
    %v363 = vunpack.c.h.b16 %v127
    %v364 = vunpack.c.l.b16 %v128
    %v365 = vunpack.c.h.b16 %v128
    %v366 = vunpack.c.l.b16 %v129
    %v367 = vunpack.c.h.b16 %v129
    %v368 = vunpack.c.l.b16 %v130
    %v369 = vunpack.c.h.b16 %v130
    %v370 = vunpack.c.l.b16 %v131
    %v371 = vunpack.c.h.b16 %v131
    %v372 = vpack.c.b16 %v252, %v244
    %v373 = vpack.c.b16 %v253, %v245
    %v374 = vpack.c.b16 %v254, %v246
    %v375 = vpack.c.b16 %v255, %v247
    %v376 = vpack.c.b16 %v256, %v248
    %v377 = vpack.c.b16 %v257, %v249
    %v378 = vpack.c.b16 %v258, %v250
    %v379 = vpack.c.b16 %v259, %v251
    %v380 = vpack.c.b16 %v268, %v260
    %v381 = vpack.c.b16 %v269, %v261
    %v382 = vpack.c.b16 %v270, %v262
    %v383 = vpack.c.b16 %v271, %v263
    %v384 = vpack.c.b16 %v272, %v264
    %v385 = vpack.c.b16 %v273, %v265
    %v386 = vpack.c.b16 %v274, %v266
    %v387 = vpack.c.b16 %v275, %v267
    %v388 = vpack.c.b16 %v284, %v276
    %v389 = vpack.c.b16 %v285, %v277
    %v390 = vpack.c.b16 %v286, %v278
    %v391 = vpack.c.b16 %v287, %v279
    %v392 = vpack.c.b16 %v288, %v280
    %v393 = vpack.c.b16 %v289, %v281
    %v394 = vpack.c.b16 %v290, %v282
    %v395 = vpack.c.b16 %v291, %v283
    %v396 = vpack.c.b16 %v300, %v292
    %v397 = vpack.c.b16 %v301, %v293
    %v398 = vpack.c.b16 %v302, %v294
    %v399 = vpack.c.b16 %v303, %v295
    %v400 = vpack.c.b16 %v304, %v296
    %v401 = vpack.c.b16 %v305, %v297
    %v402 = vpack.c.b16 %v306, %v298
    %v403 = vpack.c.b16 %v307, %v299
    %v404 = vpack.c.b16 %v316, %v308
    %v405 = vpack.c.b16 %v317, %v309
    %v406 = vpack.c.b16 %v318, %v310
    %v407 = vpack.c.b16 %v319, %v311
    %v408 = vpack.c.b16 %v320, %v312
    %v409 = vpack.c.b16 %v321, %v313
    %v410 = vpack.c.b16 %v322, %v314
    %v411 = vpack.c.b16 %v323, %v315
    %v412 = vpack.c.b16 %v332, %v324
    %v413 = vpack.c.b16 %v333, %v325
    %v414 = vpack.c.b16 %v334, %v326
    %v415 = vpack.c.b16 %v335, %v327
    %v416 = vpack.c.b16 %v336, %v328
    %v417 = vpack.c.b16 %v337, %v329
    %v418 = vpack.c.b16 %v338, %v330
    %v419 = vpack.c.b16 %v339, %v331
    %v420 = vpack.c.b16 %v348, %v340
    %v421 = vpack.c.b16 %v349, %v341
    %v422 = vpack.c.b16 %v350, %v342
    %v423 = vpack.c.b16 %v351, %v343
    %v424 = vpack.c.b16 %v352, %v344
    %v425 = vpack.c.b16 %v353, %v345
    %v426 = vpack.c.b16 %v354, %v346
    %v427 = vpack.c.b16 %v355, %v347
    %v428 = vpack.c.b16 %v364, %v356
    %v429 = vpack.c.b16 %v365, %v357
    %v430 = vpack.c.b16 %v366, %v358
    %v431 = vpack.c.b16 %v367, %v359
    %v432 = vpack.c.b16 %v368, %v360
    %v433 = vpack.c.b16 %v369, %v361
    %v434 = vpack.c.b16 %v370, %v362
    %v435 = vpack.c.b16 %v371, %v363
    %500 = vmatprep.subr.bf16.mxu0 %v373
    %501 = vmatpush1.bf16.msra.mxu0 %v372
    %502 = vmatprep.subr.bf16.mxu0 %v381
    %503 = vmatpush1.bf16.msra.mxu0 %v380
    %504 = vmatprep.subr.bf16.mxu0 %v389
    %505 = vmatpush1.bf16.msra.mxu0 %v388
    %506 = vmatprep.subr.bf16.mxu0 %v397
    %507 = vmatpush1.bf16.msra.mxu0 %v396
    %508 = vmatprep.subr.bf16.mxu0 %v405
    %509 = vmatpush1.bf16.msra.mxu0 %v404
    %510 = vmatprep.subr.bf16.mxu0 %v413
    %511 = vmatpush1.bf16.msra.mxu0 %v412
    %512 = vmatprep.subr.bf16.mxu0 %v421
    %513 = vmatpush1.bf16.msra.mxu0 %v420
    %514 = vmatprep.subr.bf16.mxu0 %v429
    %515 = vmatpush1.bf16.msra.mxu0 %v428
    %516 = vmatprep.subr.bf16.mxu0 0
    %517 = vmatpush1.bf16.msra.mxu0 0
    %518 = vmatprep.subr.bf16.mxu0 0
    %519 = vmatpush1.bf16.msra.mxu0 0
    %520 = vmatprep.subr.bf16.mxu0 0
    %521 = vmatpush1.bf16.msra.mxu0 0
    %522 = vmatprep.subr.bf16.mxu0 0
    %523 = vmatpush1.bf16.msra.mxu0 0
    %524 = vmatprep.subr.bf16.mxu0 0
    %525 = vmatpush1.bf16.msra.mxu0 0
    %526 = vmatprep.subr.bf16.mxu0 0
    %527 = vmatpush1.bf16.msra.mxu0 0
    %528 = vmatprep.subr.bf16.mxu0 0
    %529 = vmatpush1.bf16.msra.mxu0 0
    %530 = vmatprep.subr.bf16.mxu0 0
    %531 = vmatpush1.bf16.msra.mxu0 0
    %532 = vmatprep.mubr.bf16.mxu0 0
    %533 = vmatmul.mubr.bf16.gmra.mrb[0].mxu0 %v178
    %v534 = vpop.f32.mrb[0].mxu0
    %v535 = vadd.f32 %v137, %v534
    %v536 = vpop.f32.mrb[0].mxu0
    %v537 = vadd.f32 %v141, %v536
    %v538 = vpop.f32.mrb[0].mxu0
    %v539 = vadd.f32 %v137, %v538
    %v540 = vpop.f32.mrb[0].mxu0
    %v541 = vadd.f32 %v141, %v540
    %542 = vdwg.mxu0
    %543 = vmatprep.subr.bf16.mxu0 %v375
    %544 = vmatpush1.bf16.msra.mxu0 %v374
    %545 = vmatprep.subr.bf16.mxu0 %v383
    %546 = vmatpush1.bf16.msra.mxu0 %v382
    %547 = vmatprep.subr.bf16.mxu0 %v391
    %548 = vmatpush1.bf16.msra.mxu0 %v390
    %549 = vmatprep.subr.bf16.mxu0 %v399
    %550 = vmatpush1.bf16.msra.mxu0 %v398
    %551 = vmatprep.subr.bf16.mxu0 %v407
    %552 = vmatpush1.bf16.msra.mxu0 %v406
    %553 = vmatprep.subr.bf16.mxu0 %v415
    %554 = vmatpush1.bf16.msra.mxu0 %v414
    %555 = vmatprep.subr.bf16.mxu0 %v423
    %556 = vmatpush1.bf16.msra.mxu0 %v422
    %557 = vmatprep.subr.bf16.mxu0 %v431
    %558 = vmatpush1.bf16.msra.mxu0 %v430
    %559 = vmatprep.subr.bf16.mxu0 0
    %560 = vmatpush1.bf16.msra.mxu0 0
    %561 = vmatprep.subr.bf16.mxu0 0
    %562 = vmatpush1.bf16.msra.mxu0 0
    %563 = vmatprep.subr.bf16.mxu0 0
    %564 = vmatpush1.bf16.msra.mxu0 0
    %565 = vmatprep.subr.bf16.mxu0 0
    %566 = vmatpush1.bf16.msra.mxu0 0
    %567 = vmatprep.subr.bf16.mxu0 0
    %568 = vmatpush1.bf16.msra.mxu0 0
    %569 = vmatprep.subr.bf16.mxu0 0
    %570 = vmatpush1.bf16.msra.mxu0 0
    %571 = vmatprep.subr.bf16.mxu0 0
    %572 = vmatpush1.bf16.msra.mxu0 0
    %573 = vmatprep.subr.bf16.mxu0 0
    %574 = vmatpush1.bf16.msra.mxu0 0
    %575 = vmatprep.mubr.bf16.mxu0 0
    %576 = vmatmul.mubr.bf16.gmra.mrb[0].mxu0 %v178
    %v577 = vpop.f32.mrb[0].mxu0
    %v578 = vadd.f32 %v145, %v577
    %v579 = vpop.f32.mrb[0].mxu0
    %v580 = vadd.f32 %v149, %v579
    %v581 = vpop.f32.mrb[0].mxu0
    %v582 = vadd.f32 %v145, %v581
    %v583 = vpop.f32.mrb[0].mxu0
    %v584 = vadd.f32 %v149, %v583
    %585 = vdwg.mxu0
    %586 = vmatprep.subr.bf16.mxu0 %v377
    %587 = vmatpush1.bf16.msra.mxu0 %v376
    %588 = vmatprep.subr.bf16.mxu0 %v385
    %589 = vmatpush1.bf16.msra.mxu0 %v384
    %590 = vmatprep.subr.bf16.mxu0 %v393
    %591 = vmatpush1.bf16.msra.mxu0 %v392
    %592 = vmatprep.subr.bf16.mxu0 %v401
    %593 = vmatpush1.bf16.msra.mxu0 %v400
    %594 = vmatprep.subr.bf16.mxu0 %v409
    %595 = vmatpush1.bf16.msra.mxu0 %v408
    %596 = vmatprep.subr.bf16.mxu0 %v417
    %597 = vmatpush1.bf16.msra.mxu0 %v416
    %598 = vmatprep.subr.bf16.mxu0 %v425
    %599 = vmatpush1.bf16.msra.mxu0 %v424
    %600 = vmatprep.subr.bf16.mxu0 %v433
    %601 = vmatpush1.bf16.msra.mxu0 %v432
    %602 = vmatprep.subr.bf16.mxu0 0
    %603 = vmatpush1.bf16.msra.mxu0 0
    %604 = vmatprep.subr.bf16.mxu0 0
    %605 = vmatpush1.bf16.msra.mxu0 0
    %606 = vmatprep.subr.bf16.mxu0 0
    %607 = vmatpush1.bf16.msra.mxu0 0
    %608 = vmatprep.subr.bf16.mxu0 0
    %609 = vmatpush1.bf16.msra.mxu0 0
    %610 = vmatprep.subr.bf16.mxu0 0
    %611 = vmatpush1.bf16.msra.mxu0 0
    %612 = vmatprep.subr.bf16.mxu0 0
    %613 = vmatpush1.bf16.msra.mxu0 0
    %614 = vmatprep.subr.bf16.mxu0 0
    %615 = vmatpush1.bf16.msra.mxu0 0
    %616 = vmatprep.subr.bf16.mxu0 0
    %617 = vmatpush1.bf16.msra.mxu0 0
    %618 = vmatprep.mubr.bf16.mxu0 0
    %619 = vmatmul.mubr.bf16.gmra.mrb[0].mxu0 %v178
    %v620 = vpop.f32.mrb[0].mxu0
    %v621 = vadd.f32 %v153, %v620
    %v622 = vpop.f32.mrb[0].mxu0
    %v623 = vadd.f32 %v157, %v622
    %v624 = vpop.f32.mrb[0].mxu0
    %v625 = vadd.f32 %v153, %v624
    %v626 = vpop.f32.mrb[0].mxu0
    %v627 = vadd.f32 %v157, %v626
    %628 = vdwg.mxu0
    %629 = vmatprep.subr.bf16.mxu0 %v379
    %630 = vmatpush1.bf16.msra.mxu0 %v378
    %631 = vmatprep.subr.bf16.mxu0 %v387
    %632 = vmatpush1.bf16.msra.mxu0 %v386
    %633 = vmatprep.subr.bf16.mxu0 %v395
    %634 = vmatpush1.bf16.msra.mxu0 %v394
    %635 = vmatprep.subr.bf16.mxu0 %v403
    %636 = vmatpush1.bf16.msra.mxu0 %v402
    %637 = vmatprep.subr.bf16.mxu0 %v411
    %638 = vmatpush1.bf16.msra.mxu0 %v410
    %639 = vmatprep.subr.bf16.mxu0 %v419
    %640 = vmatpush1.bf16.msra.mxu0 %v418
    %641 = vmatprep.subr.bf16.mxu0 %v427
    %642 = vmatpush1.bf16.msra.mxu0 %v426
    %643 = vmatprep.subr.bf16.mxu0 %v435
    %644 = vmatpush1.bf16.msra.mxu0 %v434
    %645 = vmatprep.subr.bf16.mxu0 0
    %646 = vmatpush1.bf16.msra.mxu0 0
    %647 = vmatprep.subr.bf16.mxu0 0
    %648 = vmatpush1.bf16.msra.mxu0 0
    %649 = vmatprep.subr.bf16.mxu0 0
    %650 = vmatpush1.bf16.msra.mxu0 0
    %651 = vmatprep.subr.bf16.mxu0 0
    %652 = vmatpush1.bf16.msra.mxu0 0
    %653 = vmatprep.subr.bf16.mxu0 0
    %654 = vmatpush1.bf16.msra.mxu0 0
    %655 = vmatprep.subr.bf16.mxu0 0
    %656 = vmatpush1.bf16.msra.mxu0 0
    %657 = vmatprep.subr.bf16.mxu0 0
    %658 = vmatpush1.bf16.msra.mxu0 0
    %659 = vmatprep.subr.bf16.mxu0 0
    %660 = vmatpush1.bf16.msra.mxu0 0
    %661 = vmatprep.mubr.bf16.mxu0 0
    %662 = vmatmul.mubr.bf16.gmra.mrb[0].mxu0 %v178
    %v663 = vpop.f32.mrb[0].mxu0
    %v664 = vadd.f32 %v161, %v663
    %v665 = vpop.f32.mrb[0].mxu0
    %v666 = vadd.f32 %v165, %v665
    %v667 = vpop.f32.mrb[0].mxu0
    %v668 = vadd.f32 %v161, %v667
    %v669 = vpop.f32.mrb[0].mxu0
    %v670 = vadd.f32 %v165, %v669
    %671 = vdwg.mxu0
    %v672 = vmax.f32 %v535, 0.0
    %v673 = vmax.f32 %v537, 0.0
    %v674 = vmax.f32 %v578, 0.0
    %v675 = vmax.f32 %v580, 0.0
    %v676 = vmax.f32 %v621, 0.0
    %v677 = vmax.f32 %v623, 0.0
    %v678 = vmax.f32 %v664, 0.0
    %v679 = vmax.f32 %v666, 0.0
    %v680 = vmax.f32 %v539, 0.0
    %v681 = vmax.f32 %v541, 0.0
    %v682 = vmax.f32 %v582, 0.0
    %v683 = vmax.f32 %v584, 0.0
    %v684 = vmax.f32 %v625, 0.0
    %v685 = vmax.f32 %v627, 0.0
    %v686 = vmax.f32 %v668, 0.0
    %v687 = vmax.f32 %v670, 0.0
    %s688 = smul.u32 0, 1024
    %v689 = vlaneseq
    %v690 = vand.u32 %v689, 127
    %v691 = vadd.s32 %v690, 128
    %v692 = vadd.s32 %v690, 256
    %v693 = vadd.s32 %v690, 384
    %v694 = vadd.s32 %v690, 512
    %v695 = vadd.s32 %v690, 640
    %v696 = vadd.s32 %v690, 768
    %v697 = vadd.s32 %v690, 896
    %v698 = vstv %s688
    %v699 = vadd.s32 %v698, %v690
    %v700 = vadd.s32 %v698, %v691
    %v701 = vadd.s32 %v698, %v692
    %v702 = vadd.s32 %v698, %v693
    %v703 = vadd.s32 %v698, %v694
    %v704 = vadd.s32 %v698, %v695
    %v705 = vadd.s32 %v698, %v696
    %v706 = vadd.s32 %v698, %v697
    %vm707 = vcmp.lt.s32.totalorder %v699, 1000
    %vm708 = vcmp.lt.s32.totalorder %v700, 1000
    %vm709 = vcmp.lt.s32.totalorder %v701, 1000
    %vm710 = vcmp.lt.s32.totalorder %v702, 1000
    %vm711 = vcmp.lt.s32.totalorder %v703, 1000
    %vm712 = vcmp.lt.s32.totalorder %v704, 1000
    %vm713 = vcmp.lt.s32.totalorder %v705, 1000
    %vm714 = vcmp.lt.s32.totalorder %v706, 1000
    %v715 = vsel %vm707, %v672, -inf
    %v716 = vsel %vm708, %v673, -inf
    %v717 = vsel %vm709, %v674, -inf
    %v718 = vsel %vm710, %v675, -inf
    %v719 = vsel %vm711, %v676, -inf
    %v720 = vsel %vm712, %v677, -inf
    %v721 = vsel %vm713, %v678, -inf
    %v722 = vsel %vm714, %v679, -inf
    %v723 = vsel %vm707, %v680, -inf
    %v724 = vsel %vm708, %v681, -inf
    %v725 = vsel %vm709, %v682, -inf
    %v726 = vsel %vm710, %v683, -inf
    %v727 = vsel %vm711, %v684, -inf
    %v728 = vsel %vm712, %v685, -inf
    %v729 = vsel %vm713, %v686, -inf
    %v730 = vsel %vm714, %v687, -inf
    %v731 = vld [vmem:[#allocation2] sm:$0xff]
    %v732 = vld [vmem:[#allocation2 + $0x8] sm:$0xff]
    %v733 = vmax.f32 %v715, %v717
    %v734 = vmax.f32 %v716, %v718
    %v735 = vmax.f32 %v733, %v719
    %v736 = vmax.f32 %v734, %v720
    %v737 = vmax.f32 %v735, %v721
    %v738 = vmax.f32 %v736, %v722
    %v739 = vmax.f32 %v737, %v738
    %740 = vmax.xlane.f32.xlu0 %v739
    %v741 = vpop.xlane.xlu0 %740
    %v742 = vmax.f32 %v723, %v725
    %v743 = vmax.f32 %v724, %v726
    %v744 = vmax.f32 %v742, %v727
    %v745 = vmax.f32 %v743, %v728
    %v746 = vmax.f32 %v744, %v729
    %v747 = vmax.f32 %v745, %v730
    %v748 = vmax.f32 %v746, %v747
    %749 = vmax.xlane.f32.xlu0 %v748
    %v750 = vpop.xlane.xlu0 %749
    %v751 = vmax.f32 %v731, %v741
    %v752 = vmax.f32 %v732, %v750
    %v753 = vsub.f32 %v731, %v751
    %v754 = vsub.f32 %v732, %v752
    %v755 = vmul.f32 %v753, 1.442695
    %v756 = vpow.pop %v755
    %v757 = vmul.f32 %v754, 1.442695
    %v758 = vpow.pop %v757
    %v759 = vld [vmem:[#allocation3] sm:$0xff]
    %v760 = vld [vmem:[#allocation3 + $0x8] sm:$0xff]
    %v761 = vmul.f32 %v756, %v759
    %v762 = vmul.f32 %v758, %v760
    %764 = vset.pattern.permute.xlu0 0
    %765 = vperm.xlu0 %764, %v751
    %v766 = vpop.permute.xlu0 %765
    %769 = vset.pattern.permute.xlu0 0
    %770 = vperm.xlu0 %769, %v752
    %v771 = vpop.permute.xlu0 %770
    %v773 = vsub.f32 %v715, %v766
    %v774 = vsub.f32 %v716, %v766
    %v775 = vsub.f32 %v717, %v766
    %v776 = vsub.f32 %v718, %v766
    %v777 = vsub.f32 %v719, %v766
    %v778 = vsub.f32 %v720, %v766
    %v779 = vsub.f32 %v721, %v766
    %v780 = vsub.f32 %v722, %v766
    %v781 = vsub.f32 %v723, %v771
    %v782 = vsub.f32 %v724, %v771
    %v783 = vsub.f32 %v725, %v771
    %v784 = vsub.f32 %v726, %v771
    %v785 = vsub.f32 %v727, %v771
    %v786 = vsub.f32 %v728, %v771
    %v787 = vsub.f32 %v729, %v771
    %v788 = vsub.f32 %v730, %v771
    %v789 = vmul.f32 %v773, 1.442695
    %v790 = vpow.pop %v789
    %v791 = vmul.f32 %v774, 1.442695
    %v792 = vpow.pop %v791
    %v793 = vmul.f32 %v775, 1.442695
    %v794 = vpow.pop %v793
    %v795 = vmul.f32 %v776, 1.442695
    %v796 = vpow.pop %v795
    %v797 = vmul.f32 %v777, 1.442695
    %v798 = vpow.pop %v797
    %v799 = vmul.f32 %v778, 1.442695
    %v800 = vpow.pop %v799
    %v801 = vmul.f32 %v779, 1.442695
    %v802 = vpow.pop %v801
    %v803 = vmul.f32 %v780, 1.442695
    %v804 = vpow.pop %v803
    %v805 = vmul.f32 %v781, 1.442695
    %v806 = vpow.pop %v805
    %v807 = vmul.f32 %v782, 1.442695
    %v808 = vpow.pop %v807
    %v809 = vmul.f32 %v783, 1.442695
    %v810 = vpow.pop %v809
    %v811 = vmul.f32 %v784, 1.442695
    %v812 = vpow.pop %v811
    %v813 = vmul.f32 %v785, 1.442695
    %v814 = vpow.pop %v813
    %v815 = vmul.f32 %v786, 1.442695
    %v816 = vpow.pop %v815
    %v817 = vmul.f32 %v787, 1.442695
    %v818 = vpow.pop %v817
    %v819 = vmul.f32 %v788, 1.442695
    %v820 = vpow.pop %v819
    %v821 = vadd.f32 %v790, %v792
    %v822 = vadd.f32 %v821, %v794
    %v823 = vadd.f32 %v822, %v796
    %v824 = vadd.f32 %v823, %v798
    %v825 = vadd.f32 %v824, %v800
    %v826 = vadd.f32 %v825, %v802
    %v827 = vadd.f32 %v826, %v804
    %828 = vadd.xlane.f32.xlu0 %v827
    %v829 = vpop.xlane.xlu0 %828
    %v830 = vadd.f32 %v806, %v808
    %v831 = vadd.f32 %v830, %v810
    %v832 = vadd.f32 %v831, %v812
    %v833 = vadd.f32 %v832, %v814
    %v834 = vadd.f32 %v833, %v816
    %v835 = vadd.f32 %v834, %v818
    %v836 = vadd.f32 %v835, %v820
    %837 = vadd.xlane.f32.xlu0 %v836
    %v838 = vpop.xlane.xlu0 %837
    %v839 = vadd.f32 %v761, %v829
    %v840 = vadd.f32 %v762, %v838
    %vm841 = vcmask 7168
    %842 = vst.msk [vmem:[#allocation3] sm:$0xff] %vm841, %v839
    %843 = vst.msk [vmem:[#allocation3 + $0x8] sm:$0xff] %vm841, %v840
    %844 = vst.msk [vmem:[#allocation2] sm:$0xff] %vm841, %v751
    %845 = vst.msk [vmem:[#allocation2 + $0x8] sm:$0xff] %vm841, %v752
    %846 = vst [vmem:[#allocation10] sm:$0xff] %v715
    %847 = vst [vmem:[#allocation10 + $0x8] sm:$0xff] %v716
    %848 = vst [vmem:[#allocation10 + $0x10] sm:$0xff] %v717
    %849 = vst [vmem:[#allocation10 + $0x18] sm:$0xff] %v718
    %850 = vst [vmem:[#allocation10 + $0x20] sm:$0xff] %v719
    %851 = vst [vmem:[#allocation10 + $0x28] sm:$0xff] %v720
    %852 = vst [vmem:[#allocation10 + $0x30] sm:$0xff] %v721
    %853 = vst [vmem:[#allocation10 + $0x38] sm:$0xff] %v722
    %854 = vst [vmem:[#allocation10 + $0x40] sm:$0xff] %v723
    %855 = vst [vmem:[#allocation10 + $0x48] sm:$0xff] %v724
    %856 = vst [vmem:[#allocation10 + $0x50] sm:$0xff] %v725
    %857 = vst [vmem:[#allocation10 + $0x58] sm:$0xff] %v726
    %858 = vst [vmem:[#allocation10 + $0x60] sm:$0xff] %v727
    %859 = vst [vmem:[#allocation10 + $0x68] sm:$0xff] %v728
    %860 = vst [vmem:[#allocation10 + $0x70] sm:$0xff] %v729
    %861 = vst [vmem:[#allocation10 + $0x78] sm:$0xff] %v730
    // Predicated region
    $region30: #{tpu_custom_call.1} parent=1 // pred_check
      %p862 = pneg %p57
    $region31: #{tpu_custom_call.1} parent=1 // pred_check_branch
      %864 = sbr.rel (%p862) target = $region33
    $region32: #{tpu_custom_call.1} parent=1 // pred_region
      %v865 = vld [vmem:[#allocation2] sm:$0xff]
      %v866 = vld [vmem:[#allocation2 + $0x8] sm:$0xff]
      %v867 = vld [vmem:[#allocation3] sm:$0xff]
      %v868 = vld [vmem:[#allocation3 + $0x8] sm:$0xff]
      %v869 = vlog2.pop %v867
      %v870 = vmul.f32 %v869, 0.6931472
      %v871 = vlog2.pop %v868
      %v872 = vmul.f32 %v871, 0.6931472
      %v873 = vadd.f32 %v865, %v870
      %v874 = vadd.f32 %v866, %v872
      %875 = vst.msk [vmem:[%s4] sm:$0xff] %vm841, %v873
      %876 = vst.msk [vmem:[%s4 + $0x8] sm:$0xff] %vm841, %v874
    $region33: #{tpu_custom_call.1} parent=1 // pred_fallthru
      _
    // Predicated region
    $region34: #{tpu_custom_call.1} parent=1 // pred_check
      _
    $region35: #{tpu_custom_call.1} parent=1 // pred_check_branch
      %878 = sbr.rel (0) target = $region37
    $region36: #{tpu_custom_call.1} parent=1 // pred_region
      %s880 = ssub.s32 2048, 2048
      %881 = vsyncadd [#allocation6], %s880
      %s882 = sshll.u32 [#allocation10], 4
      %s883 = int_to_ptr.vmem [resolvable:$true] %s882
      %888 = dma.vmem_to_hbm [thread:$0]  %s883, 2048, %s3, [#allocation6], 1024, 1024, 64
    $region37: #{tpu_custom_call.1} parent=1 // pred_fallthru
      _
    // Predicated region
    $region38: #{tpu_custom_call.1} parent=1 // pred_check
      _
    $region39: #{tpu_custom_call.1} parent=1 // pred_check_branch
      %890 = sbr.rel (0) target = $region41
    $region40: #{tpu_custom_call.1} parent=1 // pred_region
      _
    $region41: #{tpu_custom_call.1} parent=1 // pred_fallthru
      _
    // Predicated region
    $region42: #{tpu_custom_call.1} parent=1 // pred_check
      _
    $region43: #{tpu_custom_call.1} parent=1 // pred_check_branch
      %892 = sbr.rel (0) target = $region45
    $region44: #{tpu_custom_call.1} parent=1 // pred_region
      %893 = dma.done [#allocation6], 2048
    $region45: #{tpu_custom_call.1} parent=1 // pred_fallthru
      _
    // Predicated region
    $region46: #{tpu_custom_call.1} parent=1 // pred_check
      _
    $region47: #{tpu_custom_call.1} parent=1 // pred_check_branch
      %895 = sbr.rel (0) target = $region49
    $region48: #{tpu_custom_call.1} parent=1 // pred_region
      _
    $region49: #{tpu_custom_call.1} parent=1 // pred_fallthru
      _
    %896 = vsyncpa [#allocation5], 1
    %897 = vsyncpa [#allocation8], 1
    %898 = vsyncpa [#allocation6], 1

</llo_original>
